<compile_context>
chip_gen: v7x
topology: tpu7x:2x2x1
jax: 0.10.0
libtpu: 0.0.40
codegen_flags: <defaults>
</compile_context>

<pallas_src>
import math
import numpy as np

import jax
import jax.numpy as jnp
from jax.experimental import pallas as pl
from jax.experimental.pallas import tpu as pltpu

# ---------------- configuration (synthetic, small shapes) --------------------
B, C, H, W = 2, 4, 16, 16          # batch, feature channels, feature spatial
IMG_H, IMG_W = 32, 32              # original image size -> spatial_scale = 0.5
NUM_PROPOSALS = 16                 # proposals per image
POOL = 7                           # RoIAlign output size
SAMPLING_RATIO = 2
SPATIAL_SCALE = H / IMG_H
REPR = 32                          # TwoMLPHead representation size
NUM_CLASSES = 5                    # includes background class 0
SCORE_THRESH = 0.05
NMS_THRESH = 0.5
DET_PER_IMG = 10
BBOX_REG_WEIGHTS = (10.0, 10.0, 5.0, 5.0)
BBOX_XFORM_CLIP = math.log(1000.0 / 16.0)

N_ROIS = B * NUM_PROPOSALS
PQ = POOL * POOL                   # 49
PQ_PAD = 64                        # per-channel chunk padded to 64 lanes
FEAT = C * PQ                      # 196 (torch flatten size)
FEAT_PAD = C * PQ_PAD              # 256 -> two clean 128-lane groups for fc6
GROUP = 128                        # lane-group width for head / output layout
HEAD_W = 5 * GROUP                 # [logits | dx | dy | dw | dh] groups
OUT_W = 5 * GROUP                  # [scores | x1 | y1 | x2 | y2] groups
HW = H * W                         # 256 pooling contraction dim


# --------------- Pallas kernel: fused box_head + predictor + decode ----------
def fused_roi_head_kernel(x_ref, w6_ref, b6_ref, w7_ref, b7_ref,
                          wh_ref, bh_ref, scale_ref, prop_ref, out_ref):
    """fc6+ReLU -> fc7+ReLU -> fused cls|bbox head -> softmax + decode + clip.

    Fused-head lane layout (128-lane groups, arranged host-side):
      group 0: class logits (pad lanes biased to -1e9 so full-group softmax
               is exact), groups 1..4: dx, dy, dw, dh (pad lanes zero).
    scale_ref: (1, HEAD_W) = [1 | 1/wx | 1/wy | 1/ww | 1/wh] per lane group.
    prop_ref columns: [x1, y1, x2, y2, img_h, img_w, 0, 0]  (per RoI).
    Output slab: [scores | x1 | y1 | x2 | y2], one 128-lane group each.
    """
    G = GROUP

    # TwoMLPHead (bf16 operands, f32 MXU accumulation, f32 VPU math)
    h = jnp.dot(x_ref[...], w6_ref[...],
                preferred_element_type=jnp.float32) + b6_ref[...]
    h = jnp.maximum(h, 0.0)
    h = jnp.dot(h.astype(jnp.bfloat16), w7_ref[...],
                preferred_element_type=jnp.float32) + b7_ref[...]
    h = jnp.maximum(h, 0.0)

    # FastRCNNPredictor: one fused matmul for cls_score and bbox_pred, then a
    # single full-width multiply replaces the four divides by bbox_reg_weights.
    head = jnp.dot(h.astype(jnp.bfloat16), wh_ref[...],
                   preferred_element_type=jnp.float32) + bh_ref[...]
    head = head * scale_ref[...]

    logits = head[:, 0:G]
    dx = head[:, G:2 * G]
    dy = head[:, 2 * G:3 * G]
    # single clamp + single exp over the contiguous [dw | dh] 256-lane block
    dwdh = jnp.minimum(head[:, 3 * G:5 * G], BBOX_XFORM_CLIP)
    ewh = jnp.exp(dwdh)
    exp_dw = ewh[:, 0:G]
    exp_dh = ewh[:, G:2 * G]

    # exact softmax over classes (pad lanes carry -1e9 logits -> contribute 0)
    m = jnp.max(logits, axis=-1, keepdims=True)
    e = jnp.exp(logits - m)
    scores = e / jnp.sum(e, axis=-1, keepdims=True)

    # BoxCoder.decode_single
    p = prop_ref[...]
    px1, py1, px2, py2 = p[:, 0:1], p[:, 1:2], p[:, 2:3], p[:, 3:4]
    widths = px2 - px1
    heights = py2 - py1
    ctr_x = px1 + 0.5 * widths
    ctr_y = py1 + 0.5 * heights

    pred_ctr_x = dx * widths + ctr_x
    pred_ctr_y = dy * heights + ctr_y
    pred_w = exp_dw * widths
    pred_h = exp_dh * heights

    # clip_boxes_to_image
    im_h = p[:, 4:5]
    im_w = p[:, 5:6]
    x1 = jnp.clip(pred_ctr_x - 0.5 * pred_w, 0.0, im_w)
    y1 = jnp.clip(pred_ctr_y - 0.5 * pred_h, 0.0, im_h)
    x2 = jnp.clip(pred_ctr_x + 0.5 * pred_w, 0.0, im_w)
    y2 = jnp.clip(pred_ctr_y + 0.5 * pred_h, 0.0, im_h)

    out_ref[...] = jnp.concatenate([scores, x1, y1, x2, y2], axis=-1)


def run_fused_roi_head(x_flat, propinfo, inv_scale, params):
    W6, b6, W7, b7, Wh, bh = params
    # Single invocation, no grid: 32 RoIs are far below one MXU pass, so any
    # grid/pipelining here would be pure per-step overhead.  Whole arrays in VMEM.
    flops = 2 * N_ROIS * (FEAT_PAD * REPR + REPR * REPR + REPR * HEAD_W)
    transcendentals = N_ROIS * (GROUP + 2 * GROUP)          # softmax exp + [dw|dh] exp
    bytes_accessed = (
        N_ROIS * FEAT_PAD * 2                                # x (bf16)
        + (FEAT_PAD * REPR + REPR * REPR + REPR * HEAD_W) * 2  # bf16 weights
        + (REPR + REPR + HEAD_W + HEAD_W) * 4                # f32 biases + scale row
        + N_ROIS * 8 * 4                                     # propinfo
        + N_ROIS * OUT_W * 4)                                # output slab
    vmem_spec = pl.BlockSpec(memory_space=pltpu.MemorySpace.VMEM)
    return pl.pallas_call(
        fused_roi_head_kernel,
        out_shape=jax.ShapeDtypeStruct((N_ROIS, OUT_W), jnp.float32),
        in_specs=[vmem_spec] * 9,
        out_specs=vmem_spec,
        compiler_params=pltpu.CompilerParams(vmem_limit_bytes=32 * 1024 * 1024),
        cost_estimate=pl.CostEstimate(flops=flops,
                                      transcendentals=transcendentals,
                                      bytes_accessed=bytes_accessed),
    )(x_flat, W6, b6, W7, b7, Wh, bh, inv_scale, propinfo)


# --------- RoIAlign as ONE kron contraction over H*W (MXU-shaped) ------------
def _axis_interp_weights(start, length, size):
    """Separable bilinear sampling weights for one spatial axis.

    start, length: [N] scaled RoI start / extent in feature coords.
    Returns [N, POOL, size] weights matching torchvision roi_align
    (aligned=False): hat-function bilinear weights, samples with coord < -1 or
    coord > size contribute zero, otherwise coord clamped to [0, size-1],
    averaged over SAMPLING_RATIO sample points per bin.
    """
    bin_sz = length / POOL
    bins = jnp.arange(POOL, dtype=jnp.float32)
    sub = (jnp.arange(SAMPLING_RATIO, dtype=jnp.float32) + 0.5) / SAMPLING_RATIO
    coord = start[:, None, None] + (bins[:, None] + sub[None, :]) * bin_sz[:, None, None]
    valid = ((coord >= -1.0) & (coord <= float(size))).astype(jnp.float32)
    cc = jnp.clip(coord, 0.0, float(size) - 1.0)
    grid = jnp.arange(size, dtype=jnp.float32)
    w = jnp.maximum(0.0, 1.0 - jnp.abs(cc[..., None] - grid))   # [N, POOL, SR, size]
    w = w * valid[..., None]
    return w.sum(axis=-2) / SAMPLING_RATIO                       # [N, POOL, size]


def roi_align_pooled(features, prop_flat):
    """RoIAlign as a single batched contraction with K = H*W (=256).

    features: [B, C, H, W]; prop_flat: [N, 4] in image coordinates.
    Returns the pooled activation slab [N, FEAT_PAD] (per-channel chunks of
    PQ_PAD lanes, pq-minor), matching the padded fc6 weight row layout.
    """
    sx = prop_flat[:, 0] * SPATIAL_SCALE
    sy = prop_flat[:, 1] * SPATIAL_SCALE
    lx = jnp.maximum(prop_flat[:, 2] * SPATIAL_SCALE - sx, 1.0)
    ly = jnp.maximum(prop_flat[:, 3] * SPATIAL_SCALE - sy, 1.0)
    Ay = _axis_interp_weights(sy, ly, H)                         # [N, POOL, H]
    Ax = _axis_interp_weights(sx, lx, W)                         # [N, POOL, W]
    # per-RoI kron pooling matrix: pmat[n, p*POOL+q, h*W+w] = Ay[n,p,h]*Ax[n,q,w]
    pmat = (Ay[:, :, None, :, None] * Ax[:, None, :, None, :]).reshape(N_ROIS, PQ, HW)
    pmat = jnp.pad(pmat, ((0, 0), (0, PQ_PAD - PQ), (0, 0)))     # [N, PQ_PAD, HW]

    img_idx = jnp.repeat(jnp.arange(B), NUM_PROPOSALS)
    featflat = features.reshape(B, C, HW)[img_idx]               # [N, C, HW]
    pooled = jnp.einsum('nck,npk->ncp', featflat, pmat)          # K = 256 contraction
    return pooled.reshape(N_ROIS, FEAT_PAD)                      # lane-dense slab


@jax.jit
def device_forward(features, proposals, imghw,
                   W6, b6, W7, b7, Wh, bh, inv_scale):
    """features [B,C,H,W]; proposals [B,NP,4]; imghw [B,2] -> packed [N, OUT_W]."""
    prop_flat = proposals.reshape(N_ROIS, 4)
    x_flat = roi_align_pooled(features, prop_flat).astype(jnp.bfloat16)
    imghw_roi = jnp.repeat(imghw, NUM_PROPOSALS, axis=0)         # [N, 2]
    propinfo = jnp.concatenate(
        [prop_flat, imghw_roi, jnp.zeros((N_ROIS, 2), jnp.float32)], axis=1)
    return run_fused_roi_head(x_flat, propinfo, inv_scale,
                              (W6, b6, W7, b7, Wh, bh))


# ---------------- numpy glue: NMS / filtering (dynamic shapes) ---------------
def nms_np(boxes, scores, iou_thresh):
    if boxes.shape[0] == 0:
        return np.zeros((0,), dtype=np.int64)
    x1, y1, x2, y2 = boxes[:, 0], boxes[:, 1], boxes[:, 2], boxes[:, 3]
    areas = (x2 - x1) * (y2 - y1)
    order = np.argsort(-scores, kind="stable")
    keep = []
    while order.size > 0:
        i = order[0]
        keep.append(i)
        if order.size == 1:
            break
        rest = order[1:]
        xx1 = np.maximum(x1[i], x1[rest])
        yy1 = np.maximum(y1[i], y1[rest])
        xx2 = np.minimum(x2[i], x2[rest])
        yy2 = np.minimum(y2[i], y2[rest])
        inter = np.maximum(0.0, xx2 - xx1) * np.maximum(0.0, yy2 - yy1)
        iou = inter / (areas[i] + areas[rest] - inter + 1e-12)
        order = rest[iou <= iou_thresh]
    return np.asarray(keep, dtype=np.int64)


def batched_nms_np(boxes, scores, labels, iou_thresh):
    if boxes.shape[0] == 0:
        return np.zeros((0,), dtype=np.int64)
    max_coord = boxes.max()
    offsets = labels.astype(boxes.dtype) * (max_coord + 1.0)
    return nms_np(boxes + offsets[:, None], scores, iou_thresh)


def postprocess_detections(scores_all, boxes_all, boxes_per_image):
    """scores_all: [N, K]; boxes_all: [N, K, 4] (already decoded + clipped)."""
    results = []
    start = 0
    for n in boxes_per_image:
        sc = scores_all[start:start + n]
        bx = boxes_all[start:start + n]
        start += n
        # drop background class 0
        bx = bx[:, 1:, :].reshape(-1, 4)
        sc = sc[:, 1:].reshape(-1)
        lb = np.tile(np.arange(1, NUM_CLASSES), (n, 1)).reshape(-1)
        inds = np.where(sc > SCORE_THRESH)[0]
        bx, sc, lb = bx[inds], sc[inds], lb[inds]
        # remove_small_boxes(min_size=1.0) as in the reference module
        ws, hs = bx[:, 2] - bx[:, 0], bx[:, 3] - bx[:, 1]
        keep = np.where((ws >= 1.0) & (hs >= 1.0))[0]
        bx, sc, lb = bx[keep], sc[keep], lb[keep]
        keep = batched_nms_np(bx, sc, lb, NMS_THRESH)[:DET_PER_IMG]
        bx, sc, lb = bx[keep], sc[keep], lb[keep]
        results.append({"boxes": bx, "labels": lb.astype(np.int64), "scores": sc})
    return results


# ---------------- RoIHeads forward (eval mode) --------------------------------
def roi_heads_forward(features, proposals_list, image_shapes, params, inv_scale):
    W6, b6, W7, b7, Wh, bh = params
    proposals = jnp.stack(proposals_list, axis=0)                 # [B, NP, 4]
    imghw = jnp.array([[float(ih), float(iw)] for (ih, iw) in image_shapes],
                      jnp.float32)                                # [B, 2]

    packed = device_forward(features, proposals, imghw,
                            W6, b6, W7, b7, Wh, bh, inv_scale)
    packed = np.asarray(jax.block_until_ready(packed))

    K, G = NUM_CLASSES, GROUP
    scores_np = packed[:, 0:K]
    boxes_np = np.stack([packed[:, 1 * G:1 * G + K],
                         packed[:, 2 * G:2 * G + K],
                         packed[:, 3 * G:3 * G + K],
                         packed[:, 4 * G:4 * G + K]], axis=-1)    # [N, K, 4]
    boxes_per_image = [int(p.shape[0]) for p in proposals_list]
    result = postprocess_detections(scores_np, boxes_np, boxes_per_image)
    losses = {}  # eval mode
    return result, losses


# ---------------- host-side parameter packing ---------------------------------
def pack_fused_head(Wc, bc, Wb, bb):
    """Fuse cls + bbox heads into one 128-lane-group-aligned matmul.

    Bbox columns are regrouped from per-class (dx,dy,dw,dh) interleaving to
    coordinate-major groups [dx_all | dy_all | dw_all | dh_all]; each group is
    zero-padded to 128 lanes.  Pad lanes of the logits group get a -1e9 bias so
    the in-kernel full-group softmax is exact over the real classes.
    """
    K = NUM_CLASSES
    Wb_g = jnp.transpose(Wb.reshape(REPR, K, 4), (0, 2, 1))        # [R, 4, K]
    bb_g = jnp.transpose(bb.reshape(1, K, 4), (0, 2, 1))           # [1, 4, K]
    padW = jnp.zeros((REPR, GROUP - K), jnp.float32)
    padb0 = jnp.zeros((1, GROUP - K), jnp.float32)
    cols_W = [Wc, padW]
    cols_b = [bc, jnp.full((1, GROUP - K), -1e9, jnp.float32)]
    for j in range(4):
        cols_W += [Wb_g[:, j, :], padW]
        cols_b += [bb_g[:, j, :], padb0]
    return jnp.concatenate(cols_W, axis=1), jnp.concatenate(cols_b, axis=1)


# ---------------------------------- main --------------------------------------
if __name__ == "__main__":
    key = jax.random.PRNGKey(0)
    kf, kcx, kcy, kw, kh, k6, k7, kc, kb = jax.random.split(key, 9)

    # features (NCHW) and proposals in image coordinates
    features = jax.random.normal(kf, (B, C, H, W), dtype=jnp.float32)
    cx = jax.random.uniform(kcx, (B, NUM_PROPOSALS), minval=6.0, maxval=IMG_W - 6.0)
    cy = jax.random.uniform(kcy, (B, NUM_PROPOSALS), minval=6.0, maxval=IMG_H - 6.0)
    pw = jax.random.uniform(kw, (B, NUM_PROPOSALS), minval=4.0, maxval=12.0)
    ph = jax.random.uniform(kh, (B, NUM_PROPOSALS), minval=4.0, maxval=12.0)
    x1 = jnp.clip(cx - pw / 2, 0.0, IMG_W)
    y1 = jnp.clip(cy - ph / 2, 0.0, IMG_H)
    x2 = jnp.clip(cx + pw / 2, 0.0, IMG_W)
    y2 = jnp.clip(cy + ph / 2, 0.0, IMG_H)
    proposals = jnp.stack([x1, y1, x2, y2], axis=-1).astype(jnp.float32)  # [B,P,4]
    proposals_list = [proposals[b] for b in range(B)]
    image_shapes = [(IMG_H, IMG_W)] * B

    # deterministic parameter init (TwoMLPHead + FastRCNNPredictor shapes)
    W6_t = jax.random.normal(k6, (FEAT, REPR), jnp.float32) * 0.05  # torch row order
    b6 = jnp.zeros((1, REPR), jnp.float32)
    W7 = jax.random.normal(k7, (REPR, REPR), jnp.float32) * 0.05
    b7 = jnp.zeros((1, REPR), jnp.float32)
    Wc = jax.random.normal(kc, (REPR, NUM_CLASSES), jnp.float32) * 0.05
    bc = jnp.zeros((1, NUM_CLASSES), jnp.float32)
    Wb = jax.random.normal(kb, (REPR, 4 * NUM_CLASSES), jnp.float32) * 0.05
    bb = jnp.zeros((1, 4 * NUM_CLASSES), jnp.float32)

    # fc6 rows re-laid into per-channel 64-row chunks (FEAT 196 -> FEAT_PAD 256)
    # (real torchvision weights map via W6_pad[c*64 + pq] = W6_torch[c*49 + pq])
    W6_pad = jnp.pad(W6_t.reshape(C, PQ, REPR),
                     ((0, 0), (0, PQ_PAD - PQ), (0, 0))).reshape(FEAT_PAD, REPR)

    Wh, bh_head = pack_fused_head(Wc, bc, Wb, bb)

    # (1, HEAD_W) reciprocal bbox_reg_weights row (1.0 for the logits group)
    rwx, rwy, rww, rwh = BBOX_REG_WEIGHTS
    inv_scale = jnp.concatenate(
        [jnp.ones((1, GROUP), jnp.float32),
         jnp.full((1, GROUP), 1.0 / rwx, jnp.float32),
         jnp.full((1, GROUP), 1.0 / rwy, jnp.float32),
         jnp.full((1, GROUP), 1.0 / rww, jnp.float32),
         jnp.full((1, GROUP), 1.0 / rwh, jnp.float32)], axis=1)

    params = (W6_pad.astype(jnp.bfloat16), b6,
              W7.astype(jnp.bfloat16), b7,
              Wh.astype(jnp.bfloat16), bh_head)

    result, losses = roi_heads_forward(features, proposals_list, image_shapes,
                                       params, inv_scale)

    # sanity: result is a list of dicts with boxes/labels/scores per image
    assert len(result) == B
    for r in result:
        assert r["boxes"].shape[-1] == 4
        assert r["boxes"].shape[0] == r["scores"].shape[0] == r["labels"].shape[0]
        assert np.all(np.isfinite(r["boxes"])) and np.all(np.isfinite(r["scores"]))
    print("KERNEL_OK")
</pallas_src>

<mosaic_0001>
module attributes {stable_mosaic.version = 11 : i64} {
  func.func @fused_roi_head_kernel(%arg0: memref<32x256xbf16, #tpu.memory_space<vmem>>, %arg1: memref<256x32xbf16, #tpu.memory_space<vmem>>, %arg2: memref<1x32xf32, #tpu.memory_space<vmem>>, %arg3: memref<32x32xbf16, #tpu.memory_space<vmem>>, %arg4: memref<1x32xf32, #tpu.memory_space<vmem>>, %arg5: memref<32x640xbf16, #tpu.memory_space<vmem>>, %arg6: memref<1x640xf32, #tpu.memory_space<vmem>>, %arg7: memref<1x640xf32, #tpu.memory_space<vmem>>, %arg8: memref<32x8xf32, #tpu.memory_space<vmem>>, %arg9: memref<32x640xf32, #tpu.memory_space<vmem>>) attributes {dimension_semantics = [], scalar_prefetch = 0 : i64, scratch_operands = 0 : i64, tpu.core_type = #tpu.core_type<tc>} {
    %c0 = arith.constant 0 : index
    %c0_0 = arith.constant 0 : index
    %0 = vector.load %arg0[%c0, %c0_0] : memref<32x256xbf16, #tpu.memory_space<vmem>>, vector<32x256xbf16>
    %c0_1 = arith.constant 0 : index
    %c0_2 = arith.constant 0 : index
    %1 = vector.load %arg1[%c0_1, %c0_2] : memref<256x32xbf16, #tpu.memory_space<vmem>>, vector<256x32xbf16>
    %cst = arith.constant dense<0.000000e+00> : vector<32x32xf32>
    %2 = tpu.matmul %0, %1, %cst {dimension_numbers = #tpu.dot_dimension_numbers<[1], [0], [0], [1], [0, 0, 1, 1], [], []>} : vector<32x256xbf16>, vector<256x32xbf16>, vector<32x32xf32> -> vector<32x32xf32>
    %c0_3 = arith.constant 0 : index
    %c0_4 = arith.constant 0 : index
    %3 = vector.load %arg2[%c0_3, %c0_4] : memref<1x32xf32, #tpu.memory_space<vmem>>, vector<1x32xf32>
    %4 = vector.broadcast %3 : vector<1x32xf32> to vector<32x32xf32>
    %5 = arith.addf %2, %4 : vector<32x32xf32>
    %cst_5 = arith.constant 0.000000e+00 : f32
    %6 = vector.broadcast %cst_5 : f32 to vector<32x32xf32>
    %7 = arith.maximumf %5, %6 : vector<32x32xf32>
    %8 = arith.truncf %7 : vector<32x32xf32> to vector<32x32xbf16>
    %c0_6 = arith.constant 0 : index
    %c0_7 = arith.constant 0 : index
    %9 = vector.load %arg3[%c0_6, %c0_7] : memref<32x32xbf16, #tpu.memory_space<vmem>>, vector<32x32xbf16>
    %cst_8 = arith.constant dense<0.000000e+00> : vector<32x32xf32>
    %10 = tpu.matmul %8, %9, %cst_8 {dimension_numbers = #tpu.dot_dimension_numbers<[1], [0], [0], [1], [0, 0, 1, 1], [], []>} : vector<32x32xbf16>, vector<32x32xbf16>, vector<32x32xf32> -> vector<32x32xf32>
    %c0_9 = arith.constant 0 : index
    %c0_10 = arith.constant 0 : index
    %11 = vector.load %arg4[%c0_9, %c0_10] : memref<1x32xf32, #tpu.memory_space<vmem>>, vector<1x32xf32>
    %12 = vector.broadcast %11 : vector<1x32xf32> to vector<32x32xf32>
    %13 = arith.addf %10, %12 : vector<32x32xf32>
    %cst_11 = arith.constant 0.000000e+00 : f32
    %14 = vector.broadcast %cst_11 : f32 to vector<32x32xf32>
    %15 = arith.maximumf %13, %14 : vector<32x32xf32>
    %16 = arith.truncf %15 : vector<32x32xf32> to vector<32x32xbf16>
    %c0_12 = arith.constant 0 : index
    %c0_13 = arith.constant 0 : index
    %17 = vector.load %arg5[%c0_12, %c0_13] : memref<32x640xbf16, #tpu.memory_space<vmem>>, vector<32x640xbf16>
    %cst_14 = arith.constant dense<0.000000e+00> : vector<32x640xf32>
    %18 = tpu.matmul %16, %17, %cst_14 {dimension_numbers = #tpu.dot_dimension_numbers<[1], [0], [0], [1], [0, 0, 1, 1], [], []>} : vector<32x32xbf16>, vector<32x640xbf16>, vector<32x640xf32> -> vector<32x640xf32>
    %c0_15 = arith.constant 0 : index
    %c0_16 = arith.constant 0 : index
    %19 = vector.load %arg6[%c0_15, %c0_16] : memref<1x640xf32, #tpu.memory_space<vmem>>, vector<1x640xf32>
    %20 = vector.broadcast %19 : vector<1x640xf32> to vector<32x640xf32>
    %21 = arith.addf %18, %20 : vector<32x640xf32>
    %c0_17 = arith.constant 0 : index
    %c0_18 = arith.constant 0 : index
    %22 = vector.load %arg7[%c0_17, %c0_18] : memref<1x640xf32, #tpu.memory_space<vmem>>, vector<1x640xf32>
    %23 = vector.broadcast %22 : vector<1x640xf32> to vector<32x640xf32>
    %24 = arith.mulf %21, %23 : vector<32x640xf32>
    %25 = vector.extract_strided_slice %24 {offsets = [0, 0], sizes = [32, 128], strides = [1, 1]} : vector<32x640xf32> to vector<32x128xf32>
    %26 = vector.extract_strided_slice %24 {offsets = [0, 128], sizes = [32, 128], strides = [1, 1]} : vector<32x640xf32> to vector<32x128xf32>
    %27 = vector.extract_strided_slice %24 {offsets = [0, 256], sizes = [32, 128], strides = [1, 1]} : vector<32x640xf32> to vector<32x128xf32>
    %28 = vector.extract_strided_slice %24 {offsets = [0, 384], sizes = [32, 256], strides = [1, 1]} : vector<32x640xf32> to vector<32x256xf32>
    %cst_19 = arith.constant 4.13516665 : f32
    %29 = vector.broadcast %cst_19 : f32 to vector<32x256xf32>
    %30 = arith.minimumf %28, %29 : vector<32x256xf32>
    %31 = math.exp %30 : vector<32x256xf32>
    %32 = vector.extract_strided_slice %31 {offsets = [0, 0], sizes = [32, 128], strides = [1, 1]} : vector<32x256xf32> to vector<32x128xf32>
    %33 = vector.extract_strided_slice %31 {offsets = [0, 128], sizes = [32, 128], strides = [1, 1]} : vector<32x256xf32> to vector<32x128xf32>
    %cst_20 = arith.constant dense<0xFF800000> : vector<32xf32>
    %34 = vector.multi_reduction <maximumf>, %25, %cst_20 [1] : vector<32x128xf32> to vector<32xf32>
    %35 = vector.shape_cast %34 : vector<32xf32> to vector<32x1xf32>
    %36 = vector.broadcast %35 : vector<32x1xf32> to vector<32x128xf32>
    %37 = arith.subf %25, %36 : vector<32x128xf32>
    %38 = math.exp %37 : vector<32x128xf32>
    %cst_21 = arith.constant dense<0.000000e+00> : vector<32xf32>
    %39 = vector.multi_reduction <add>, %38, %cst_21 [1] : vector<32x128xf32> to vector<32xf32>
    %40 = vector.shape_cast %39 : vector<32xf32> to vector<32x1xf32>
    %41 = vector.broadcast %40 : vector<32x1xf32> to vector<32x128xf32>
    %42 = arith.divf %38, %41 : vector<32x128xf32>
    %c0_22 = arith.constant 0 : index
    %c0_23 = arith.constant 0 : index
    %43 = vector.load %arg8[%c0_22, %c0_23] : memref<32x8xf32, #tpu.memory_space<vmem>>, vector<32x8xf32>
    %44 = vector.extract_strided_slice %43 {offsets = [0, 0], sizes = [32, 1], strides = [1, 1]} : vector<32x8xf32> to vector<32x1xf32>
    %45 = vector.extract_strided_slice %43 {offsets = [0, 1], sizes = [32, 1], strides = [1, 1]} : vector<32x8xf32> to vector<32x1xf32>
    %46 = vector.extract_strided_slice %43 {offsets = [0, 2], sizes = [32, 1], strides = [1, 1]} : vector<32x8xf32> to vector<32x1xf32>
    %47 = vector.extract_strided_slice %43 {offsets = [0, 3], sizes = [32, 1], strides = [1, 1]} : vector<32x8xf32> to vector<32x1xf32>
    %48 = arith.subf %46, %44 : vector<32x1xf32>
    %49 = arith.subf %47, %45 : vector<32x1xf32>
    %cst_24 = arith.constant 5.000000e-01 : f32
    %50 = vector.broadcast %cst_24 : f32 to vector<32x1xf32>
    %51 = arith.mulf %50, %48 : vector<32x1xf32>
    %52 = arith.addf %44, %51 : vector<32x1xf32>
    %cst_25 = arith.constant 5.000000e-01 : f32
    %53 = vector.broadcast %cst_25 : f32 to vector<32x1xf32>
    %54 = arith.mulf %53, %49 : vector<32x1xf32>
    %55 = arith.addf %45, %54 : vector<32x1xf32>
    %56 = vector.broadcast %48 : vector<32x1xf32> to vector<32x128xf32>
    %57 = arith.mulf %26, %56 : vector<32x128xf32>
    %58 = vector.broadcast %52 : vector<32x1xf32> to vector<32x128xf32>
    %59 = arith.addf %57, %58 : vector<32x128xf32>
    %60 = vector.broadcast %49 : vector<32x1xf32> to vector<32x128xf32>
    %61 = arith.mulf %27, %60 : vector<32x128xf32>
    %62 = vector.broadcast %55 : vector<32x1xf32> to vector<32x128xf32>
    %63 = arith.addf %61, %62 : vector<32x128xf32>
    %64 = vector.broadcast %48 : vector<32x1xf32> to vector<32x128xf32>
    %65 = arith.mulf %32, %64 : vector<32x128xf32>
    %66 = vector.broadcast %49 : vector<32x1xf32> to vector<32x128xf32>
    %67 = arith.mulf %33, %66 : vector<32x128xf32>
    %68 = vector.extract_strided_slice %43 {offsets = [0, 4], sizes = [32, 1], strides = [1, 1]} : vector<32x8xf32> to vector<32x1xf32>
    %69 = vector.extract_strided_slice %43 {offsets = [0, 5], sizes = [32, 1], strides = [1, 1]} : vector<32x8xf32> to vector<32x1xf32>
    %cst_26 = arith.constant 5.000000e-01 : f32
    %70 = vector.broadcast %cst_26 : f32 to vector<32x128xf32>
    %71 = arith.mulf %70, %65 : vector<32x128xf32>
    %72 = arith.subf %59, %71 : vector<32x128xf32>
    %cst_27 = arith.constant 0.000000e+00 : f32
    %73 = vector.broadcast %cst_27 : f32 to vector<32x128xf32>
    %74 = arith.maximumf %73, %72 : vector<32x128xf32>
    %75 = vector.broadcast %69 : vector<32x1xf32> to vector<32x128xf32>
    %76 = arith.minimumf %75, %74 : vector<32x128xf32>
    %cst_28 = arith.constant 5.000000e-01 : f32
    %77 = vector.broadcast %cst_28 : f32 to vector<32x128xf32>
    %78 = arith.mulf %77, %67 : vector<32x128xf32>
    %79 = arith.subf %63, %78 : vector<32x128xf32>
    %cst_29 = arith.constant 0.000000e+00 : f32
    %80 = vector.broadcast %cst_29 : f32 to vector<32x128xf32>
    %81 = arith.maximumf %80, %79 : vector<32x128xf32>
    %82 = vector.broadcast %68 : vector<32x1xf32> to vector<32x128xf32>
    %83 = arith.minimumf %82, %81 : vector<32x128xf32>
    %cst_30 = arith.constant 5.000000e-01 : f32
    %84 = vector.broadcast %cst_30 : f32 to vector<32x128xf32>
    %85 = arith.mulf %84, %65 : vector<32x128xf32>
    %86 = arith.addf %59, %85 : vector<32x128xf32>
    %cst_31 = arith.constant 0.000000e+00 : f32
    %87 = vector.broadcast %cst_31 : f32 to vector<32x128xf32>
    %88 = arith.maximumf %87, %86 : vector<32x128xf32>
    %89 = vector.broadcast %69 : vector<32x1xf32> to vector<32x128xf32>
    %90 = arith.minimumf %89, %88 : vector<32x128xf32>
    %cst_32 = arith.constant 5.000000e-01 : f32
    %91 = vector.broadcast %cst_32 : f32 to vector<32x128xf32>
    %92 = arith.mulf %91, %67 : vector<32x128xf32>
    %93 = arith.addf %63, %92 : vector<32x128xf32>
    %cst_33 = arith.constant 0.000000e+00 : f32
    %94 = vector.broadcast %cst_33 : f32 to vector<32x128xf32>
    %95 = arith.maximumf %94, %93 : vector<32x128xf32>
    %96 = vector.broadcast %68 : vector<32x1xf32> to vector<32x128xf32>
    %97 = arith.minimumf %96, %95 : vector<32x128xf32>
    %98 = tpu.concatenate %42, %76, %83, %90, %97 in 1 : vector<32x128xf32>, vector<32x128xf32>, vector<32x128xf32>, vector<32x128xf32>, vector<32x128xf32> -> vector<32x640xf32>
    %c0_34 = arith.constant 0 : index
    %c0_35 = arith.constant 0 : index
    %99 = vector.load %arg9[%c0_34, %c0_35] : memref<32x640xf32, #tpu.memory_space<vmem>>, vector<32x640xf32>
    tpu.vector_store %arg9[%c0_34, %c0_35], %98 {strides = array<i32>} : memref<32x640xf32, #tpu.memory_space<vmem>>, vector<32x640xf32>,
    return
  }
}

</mosaic_0001>

<llo_original>
// kernel: device_forward.1
$region0: #{device_forward.1}
  #allocation0 [shape = 'u32[]', space=smem, size = 0x4, offset = 0x4, fixed_abs, tag = 'smem constant byte address 0x4 - core index']
  #allocation1 [shape = 'u32[144,128]{1,0:T(1,128)}', space=vmem, size = 0x12000, scoped, tag = 'internal scratch']
  %s0 = inlined_call_operand.vmem [shape: bf16[32,256], index: 0, kind: input, shape index: {}]
  %s1 = inlined_call_operand.vmem [shape: bf16[256,32], index: 1, kind: input, shape index: {}]
  %s2 = inlined_call_operand.vmem [shape: f32[1,32], index: 2, kind: input, shape index: {}]
  %s3 = inlined_call_operand.vmem [shape: bf16[32,32], index: 3, kind: input, shape index: {}]
  %s4 = inlined_call_operand.vmem [shape: f32[1,32], index: 4, kind: input, shape index: {}]
  %s5 = inlined_call_operand.vmem [shape: bf16[32,640], index: 5, kind: input, shape index: {}]
  %s6 = inlined_call_operand.vmem [shape: f32[1,640], index: 6, kind: input, shape index: {}]
  %s7 = inlined_call_operand.vmem [shape: f32[1,640], index: 7, kind: input, shape index: {}]
  %s8 = inlined_call_operand.vmem [shape: f32[32,8], index: 8, kind: input, shape index: {}]
  %s9 = inlined_call_operand.hbm [shape: f32[32,640], index: 9, kind: output, shape index: {}]
  %s10 = sld [smem:[#allocation0]]
  $region46: #{device_forward.1} parent=0
    _
  %s12 = ssub.s32 1, %s10
  %s13 = scalar_select 0, %s12, %s10
  $region1: #{device_forward.1} parent=0
    #allocation2 [shape = 'u8[81920]{0}', space=vmem, size = 0x14000, scoped, tag = 'output window, operand 0, single buffered']
    #allocation3 [shape = 's32[1]{0}', space=sflag, size = 0x4, scoped, tag = 'scoped memory for device_forward.1']
    %14 = vsyncpa [#allocation3], 0
    // Predicated region
    $region2: #{device_forward.1} parent=1 // pred_check
      _
    $region3: #{device_forward.1} parent=1 // pred_check_branch
      %16 = sbr.rel (0) target = $region5
    $region4: #{device_forward.1} parent=1 // pred_region
      _
    $region5: #{device_forward.1} parent=1 // pred_fallthru
      _
    // Predicated region
    $region6: #{device_forward.1} parent=1 // pred_check
      _
    $region7: #{device_forward.1} parent=1 // pred_check_branch
      %18 = sbr.rel (0) target = $region9
    $region8: #{device_forward.1} parent=1 // pred_region
      _
    $region9: #{device_forward.1} parent=1 // pred_fallthru
      _
    // Predicated region
    $region10: #{device_forward.1} parent=1 // pred_check
      _
    $region11: #{device_forward.1} parent=1 // pred_check_branch
      %20 = sbr.rel (0) target = $region13
    $region12: #{device_forward.1} parent=1 // pred_region
      _
    $region13: #{device_forward.1} parent=1 // pred_fallthru
      _
    // Predicated region
    $region14: #{device_forward.1} parent=1 // pred_check
      _
    $region15: #{device_forward.1} parent=1 // pred_check_branch
      %22 = sbr.rel (0) target = $region17
    $region16: #{device_forward.1} parent=1 // pred_region
      _
    $region17: #{device_forward.1} parent=1 // pred_fallthru
      _
    // Predicated region
    $region18: #{device_forward.1} parent=1 // pred_check
      _
    $region19: #{device_forward.1} parent=1 // pred_check_branch
      %24 = sbr.rel (0) target = $region21
    $region20: #{device_forward.1} parent=1 // pred_region
      _
    $region21: #{device_forward.1} parent=1 // pred_fallthru
      _
    // Predicated region
    $region22: #{device_forward.1} parent=1 // pred_check
      _
    $region23: #{device_forward.1} parent=1 // pred_check_branch
      %26 = sbr.rel (0) target = $region25
    $region24: #{device_forward.1} parent=1 // pred_region
      _
    $region25: #{device_forward.1} parent=1 // pred_fallthru
      _
    // Predicated region
    $region26: #{device_forward.1} parent=1 // pred_check
      _
    $region27: #{device_forward.1} parent=1 // pred_check_branch
      %28 = sbr.rel (0) target = $region29
    $region28: #{device_forward.1} parent=1 // pred_region
      _
    $region29: #{device_forward.1} parent=1 // pred_fallthru
      _
    // Predicated region
    $region30: #{device_forward.1} parent=1 // pred_check
      _
    $region31: #{device_forward.1} parent=1 // pred_check_branch
      %30 = sbr.rel (0) target = $region33
    $region32: #{device_forward.1} parent=1 // pred_region
      _
    $region33: #{device_forward.1} parent=1 // pred_fallthru
      _
    // Predicated region
    $region34: #{device_forward.1} parent=1 // pred_check
      _
    $region35: #{device_forward.1} parent=1 // pred_check_branch
      %32 = sbr.rel (0) target = $region37
    $region36: #{device_forward.1} parent=1 // pred_region
      _
    $region37: #{device_forward.1} parent=1 // pred_fallthru
      _
    %v34 = vld [vmem:[%s0] sm:$0xff]
    %v35 = vld [vmem:[%s0 + $0x8] sm:$0xff]
    %v36 = vld [vmem:[%s0 + $0x10] sm:$0xff]
    %v37 = vld [vmem:[%s0 + $0x18] sm:$0xff]
    %v38 = vld [vmem:[%s1] sm:$0xf]
    %v39 = vld [vmem:[%s1 + $0x4] sm:$0xf]
    %v40 = vld [vmem:[%s1 + $0x8] sm:$0xf]
    %v41 = vld [vmem:[%s1 + $0xc] sm:$0xf]
    %v42 = vld [vmem:[%s1 + $0x10] sm:$0xf]
    %v43 = vld [vmem:[%s1 + $0x14] sm:$0xf]
    %v44 = vld [vmem:[%s1 + $0x18] sm:$0xf]
    %v45 = vld [vmem:[%s1 + $0x1c] sm:$0xf]
    %v46 = vld [vmem:[%s1 + $0x20] sm:$0xf]
    %v47 = vld [vmem:[%s1 + $0x24] sm:$0xf]
    %v48 = vld [vmem:[%s1 + $0x28] sm:$0xf]
    %v49 = vld [vmem:[%s1 + $0x2c] sm:$0xf]
    %v50 = vld [vmem:[%s1 + $0x30] sm:$0xf]
    %v51 = vld [vmem:[%s1 + $0x34] sm:$0xf]
    %v52 = vld [vmem:[%s1 + $0x38] sm:$0xf]
    %v53 = vld [vmem:[%s1 + $0x3c] sm:$0xf]
    %v54 = vld [vmem:[%s1 + $0x40] sm:$0xf]
    %v55 = vld [vmem:[%s1 + $0x44] sm:$0xf]
    %v56 = vld [vmem:[%s1 + $0x48] sm:$0xf]
    %v57 = vld [vmem:[%s1 + $0x4c] sm:$0xf]
    %v58 = vld [vmem:[%s1 + $0x50] sm:$0xf]
    %v59 = vld [vmem:[%s1 + $0x54] sm:$0xf]
    %v60 = vld [vmem:[%s1 + $0x58] sm:$0xf]
    %v61 = vld [vmem:[%s1 + $0x5c] sm:$0xf]
    %v62 = vld [vmem:[%s1 + $0x60] sm:$0xf]
    %v63 = vld [vmem:[%s1 + $0x64] sm:$0xf]
    %v64 = vld [vmem:[%s1 + $0x68] sm:$0xf]
    %v65 = vld [vmem:[%s1 + $0x6c] sm:$0xf]
    %v66 = vld [vmem:[%s1 + $0x70] sm:$0xf]
    %v67 = vld [vmem:[%s1 + $0x74] sm:$0xf]
    %v68 = vld [vmem:[%s1 + $0x78] sm:$0xf]
    %v69 = vld [vmem:[%s1 + $0x7c] sm:$0xf]
    %v70 = vld [vmem:[%s2] sm:$0x1]
    %v72 = vlaneseq
    %v73 = vshrl.u32 %v72, 7
    %v74 = vsub.s32 0, %v73
    %v75 = vrot.slane %v70, %v74
    %v81 = vunpack.c.l.b16 %v34
    %v82 = vunpack.c.h.b16 %v34
    %v83 = vunpack.c.l.b16 %v35
    %v84 = vunpack.c.h.b16 %v35
    %v85 = vunpack.c.l.b16 %v36
    %v86 = vunpack.c.h.b16 %v36
    %v87 = vunpack.c.l.b16 %v37
    %v88 = vunpack.c.h.b16 %v37
    %v89 = vpack.c.b16 %v83, %v81
    %v90 = vpack.c.b16 %v84, %v82
    %v91 = vpack.c.b16 %v87, %v85
    %v92 = vpack.c.b16 %v88, %v86
    %v129 = vunpack.c.l.b16 %v38
    %v130 = vunpack.c.l.b16 %v39
    %v131 = vunpack.c.l.b16 %v40
    %v132 = vunpack.c.l.b16 %v41
    %v133 = vunpack.c.l.b16 %v42
    %v134 = vunpack.c.l.b16 %v43
    %v135 = vunpack.c.l.b16 %v44
    %v136 = vunpack.c.l.b16 %v45
    %v137 = vunpack.c.l.b16 %v46
    %v138 = vunpack.c.l.b16 %v47
    %v139 = vunpack.c.l.b16 %v48
    %v140 = vunpack.c.l.b16 %v49
    %v141 = vunpack.c.l.b16 %v50
    %v142 = vunpack.c.l.b16 %v51
    %v143 = vunpack.c.l.b16 %v52
    %v144 = vunpack.c.l.b16 %v53
    %v145 = vunpack.c.l.b16 %v54
    %v146 = vunpack.c.l.b16 %v55
    %v147 = vunpack.c.l.b16 %v56
    %v148 = vunpack.c.l.b16 %v57
    %v149 = vunpack.c.l.b16 %v58
    %v150 = vunpack.c.l.b16 %v59
    %v151 = vunpack.c.l.b16 %v60
    %v152 = vunpack.c.l.b16 %v61
    %v153 = vunpack.c.l.b16 %v62
    %v154 = vunpack.c.l.b16 %v63
    %v155 = vunpack.c.l.b16 %v64
    %v156 = vunpack.c.l.b16 %v65
    %v157 = vunpack.c.l.b16 %v66
    %v158 = vunpack.c.l.b16 %v67
    %v159 = vunpack.c.l.b16 %v68
    %v160 = vunpack.c.l.b16 %v69
    %v161 = vpack.c.b16 %v130, %v129
    %v162 = vpack.c.b16 %v132, %v131
    %v163 = vpack.c.b16 %v134, %v133
    %v164 = vpack.c.b16 %v136, %v135
    %v165 = vpack.c.b16 %v138, %v137
    %v166 = vpack.c.b16 %v140, %v139
    %v167 = vpack.c.b16 %v142, %v141
    %v168 = vpack.c.b16 %v144, %v143
    %v169 = vpack.c.b16 %v146, %v145
    %v170 = vpack.c.b16 %v148, %v147
    %v171 = vpack.c.b16 %v150, %v149
    %v172 = vpack.c.b16 %v152, %v151
    %v173 = vpack.c.b16 %v154, %v153
    %v174 = vpack.c.b16 %v156, %v155
    %v175 = vpack.c.b16 %v158, %v157
    %v176 = vpack.c.b16 %v160, %v159
    %193 = vmatprep.subr.bf16.mxu0 0
    %194 = vmatpush1.bf16.msra.mxu0 %v161
    %195 = vmatprep.subr.bf16.mxu0 0
    %196 = vmatpush1.bf16.msra.mxu0 %v162
    %197 = vmatprep.subr.bf16.mxu0 0
    %198 = vmatpush1.bf16.msra.mxu0 %v163
    %199 = vmatprep.subr.bf16.mxu0 0
    %200 = vmatpush1.bf16.msra.mxu0 %v164
    %201 = vmatprep.subr.bf16.mxu0 0
    %202 = vmatpush1.bf16.msra.mxu0 %v165
    %203 = vmatprep.subr.bf16.mxu0 0
    %204 = vmatpush1.bf16.msra.mxu0 %v166
    %205 = vmatprep.subr.bf16.mxu0 0
    %206 = vmatpush1.bf16.msra.mxu0 %v167
    %207 = vmatprep.subr.bf16.mxu0 0
    %208 = vmatpush1.bf16.msra.mxu0 %v168
    %209 = vmatprep.subr.bf16.mxu0 0
    %210 = vmatpush1.bf16.msra.mxu0 %v169
    %211 = vmatprep.subr.bf16.mxu0 0
    %212 = vmatpush1.bf16.msra.mxu0 %v170
    %213 = vmatprep.subr.bf16.mxu0 0
    %214 = vmatpush1.bf16.msra.mxu0 %v171
    %215 = vmatprep.subr.bf16.mxu0 0
    %216 = vmatpush1.bf16.msra.mxu0 %v172
    %217 = vmatprep.subr.bf16.mxu0 0
    %218 = vmatpush1.bf16.msra.mxu0 %v173
    %219 = vmatprep.subr.bf16.mxu0 0
    %220 = vmatpush1.bf16.msra.mxu0 %v174
    %221 = vmatprep.subr.bf16.mxu0 0
    %222 = vmatpush1.bf16.msra.mxu0 %v175
    %223 = vmatprep.subr.bf16.mxu0 0
    %224 = vmatpush1.bf16.msra.mxu0 %v176
    %225 = vmatprep.mubr.bf16.mxu0 %v90
    %226 = vmatmul.mubr.bf16.gmra.mrb[0].mxu0 %v89
    %v227 = vpop.f32.mrb[0].mxu0
    %v228 = vadd.f32 %v75, %v227
    %v229 = vpop.f32.mrb[0].mxu0
    %v230 = vpop.f32.mrb[0].mxu0
    %v231 = vadd.f32 %v75, %v230
    %v232 = vpop.f32.mrb[0].mxu0
    %233 = vmatprep.mubr.bf16.mxu0 %v92
    %234 = vmatmul.mubr.bf16.gmra.mrb[0].mxu0 %v91
    %v235 = vpop.f32.mrb[0].mxu0
    %v236 = vadd.f32 %v75, %v235
    %v237 = vpop.f32.mrb[0].mxu0
    %v238 = vpop.f32.mrb[0].mxu0
    %v239 = vadd.f32 %v75, %v238
    %v240 = vpop.f32.mrb[0].mxu0
    %241 = vdwg.mxu0
    %v242 = vmax.f32 %v228, 0.0
    %v243 = vmax.f32 %v231, 0.0
    %v244 = vmax.f32 %v236, 0.0
    %v245 = vmax.f32 %v239, 0.0
    %v246 = vpack.c.bf16 %v243, %v242
    %v247 = vpack.c.bf16 %v245, %v244
    %v248 = vld [vmem:[%s3] sm:$0xf]
    %v249 = vld [vmem:[%s3 + $0x4] sm:$0xf]
    %v250 = vld [vmem:[%s3 + $0x8] sm:$0xf]
    %v251 = vld [vmem:[%s3 + $0xc] sm:$0xf]
    %v252 = vld [vmem:[%s4] sm:$0x1]
    %v254 = vlaneseq
    %v255 = vshrl.u32 %v254, 7
    %v256 = vsub.s32 0, %v255
    %v257 = vrot.slane %v252, %v256
    %v263 = vunpack.c.l.b16 %v248
    %v264 = vunpack.c.l.b16 %v249
    %v265 = vunpack.c.l.b16 %v250
    %v266 = vunpack.c.l.b16 %v251
    %v267 = vpack.c.b16 %v264, %v263
    %v268 = vpack.c.b16 %v266, %v265
    %vm271 = vcmask 261120
    %v273 = vsel %vm271, %v246, 0
    %v276 = vsel %vm271, %v247, 0
    %278 = vmatprep.subr.bf16.mxu0 0
    %279 = vmatpush1.bf16.msra.mxu0 %v267
    %280 = vmatprep.subr.bf16.mxu0 0
    %281 = vmatpush1.bf16.msra.mxu0 %v268
    %282 = vmatprep.subr.bf16.mxu0 0
    %283 = vmatpush1.bf16.msra.mxu0 0
    %284 = vmatprep.subr.bf16.mxu0 0
    %285 = vmatpush1.bf16.msra.mxu0 0
    %286 = vmatprep.subr.bf16.mxu0 0
    %287 = vmatpush1.bf16.msra.mxu0 0
    %288 = vmatprep.subr.bf16.mxu0 0
    %289 = vmatpush1.bf16.msra.mxu0 0
    %290 = vmatprep.subr.bf16.mxu0 0
    %291 = vmatpush1.bf16.msra.mxu0 0
    %292 = vmatprep.subr.bf16.mxu0 0
    %293 = vmatpush1.bf16.msra.mxu0 0
    %294 = vmatprep.subr.bf16.mxu0 0
    %295 = vmatpush1.bf16.msra.mxu0 0
    %296 = vmatprep.subr.bf16.mxu0 0
    %297 = vmatpush1.bf16.msra.mxu0 0
    %298 = vmatprep.subr.bf16.mxu0 0
    %299 = vmatpush1.bf16.msra.mxu0 0
    %300 = vmatprep.subr.bf16.mxu0 0
    %301 = vmatpush1.bf16.msra.mxu0 0
    %302 = vmatprep.subr.bf16.mxu0 0
    %303 = vmatpush1.bf16.msra.mxu0 0
    %304 = vmatprep.subr.bf16.mxu0 0
    %305 = vmatpush1.bf16.msra.mxu0 0
    %306 = vmatprep.subr.bf16.mxu0 0
    %307 = vmatpush1.bf16.msra.mxu0 0
    %308 = vmatprep.subr.bf16.mxu0 0
    %309 = vmatpush1.bf16.msra.mxu0 0
    %310 = vmatprep.mubr.bf16.mxu0 0
    %311 = vmatmul.mubr.bf16.gmra.mrb[0].mxu0 %v273
    %v312 = vpop.f32.mrb[0].mxu0
    %v313 = vadd.f32 %v257, %v312
    %v314 = vpop.f32.mrb[0].mxu0
    %v315 = vpop.f32.mrb[0].mxu0
    %v316 = vadd.f32 %v257, %v315
    %v317 = vpop.f32.mrb[0].mxu0
    %318 = vmatprep.mubr.bf16.mxu0 0
    %319 = vmatmul.mubr.bf16.gmra.mrb[0].mxu0 %v276
    %v320 = vpop.f32.mrb[0].mxu0
    %v321 = vadd.f32 %v257, %v320
    %v322 = vpop.f32.mrb[0].mxu0
    %v323 = vpop.f32.mrb[0].mxu0
    %v324 = vadd.f32 %v257, %v323
    %v325 = vpop.f32.mrb[0].mxu0
    %326 = vdwg.mxu0
    %v327 = vmax.f32 %v313, 0.0
    %v328 = vmax.f32 %v316, 0.0
    %v329 = vmax.f32 %v321, 0.0
    %v330 = vmax.f32 %v324, 0.0
    %v331 = vpack.c.bf16 %v328, %v327
    %v332 = vpack.c.bf16 %v330, %v329
    %v333 = vld [vmem:[%s5] sm:$0xff]
    %v334 = vld [vmem:[%s5 + $0x8] sm:$0xff]
    %v335 = vld [vmem:[%s5 + $0x10] sm:$0xf]
    %v336 = vld [vmem:[%s5 + $0x14] sm:$0xff]
    %v337 = vld [vmem:[%s5 + $0x1c] sm:$0xff]
    %v338 = vld [vmem:[%s5 + $0x24] sm:$0xf]
    %v339 = vld [vmem:[%s5 + $0x28] sm:$0xff]
    %v340 = vld [vmem:[%s5 + $0x30] sm:$0xff]
    %v341 = vld [vmem:[%s5 + $0x38] sm:$0xf]
    %v342 = vld [vmem:[%s5 + $0x3c] sm:$0xff]
    %v343 = vld [vmem:[%s5 + $0x44] sm:$0xff]
    %v344 = vld [vmem:[%s5 + $0x4c] sm:$0xf]
    %v345 = vld [vmem:[%s6] sm:$0x1f]
    %v347 = vlaneseq
    %v348 = vshrl.u32 %v347, 7
    %v349 = vsub.s32 0, %v348
    %v350 = vrot.slane %v345, %v349
    %v351 = vlaneseq
    %v352 = vshrl.u32 %v351, 7
    %v353 = vsub.s32 1, %v352
    %v354 = vrot.slane %v345, %v353
    %v355 = vlaneseq
    %v356 = vshrl.u32 %v355, 7
    %v357 = vsub.s32 2, %v356
    %v358 = vrot.slane %v345, %v357
    %v359 = vlaneseq
    %v360 = vshrl.u32 %v359, 7
    %v361 = vsub.s32 3, %v360
    %v362 = vrot.slane %v345, %v361
    %v363 = vlaneseq
    %v364 = vshrl.u32 %v363, 7
    %v365 = vsub.s32 4, %v364
    %v366 = vrot.slane %v345, %v365
    %v384 = vunpack.c.l.b16 %v333
    %v385 = vunpack.c.h.b16 %v333
    %v386 = vunpack.c.l.b16 %v334
    %v387 = vunpack.c.h.b16 %v334
    %v388 = vunpack.c.l.b16 %v335
    %v389 = vunpack.c.l.b16 %v336
    %v390 = vunpack.c.h.b16 %v336
    %v391 = vunpack.c.l.b16 %v337
    %v392 = vunpack.c.h.b16 %v337
    %v393 = vunpack.c.l.b16 %v338
    %v394 = vunpack.c.l.b16 %v339
    %v395 = vunpack.c.h.b16 %v339
    %v396 = vunpack.c.l.b16 %v340
    %v397 = vunpack.c.h.b16 %v340
    %v398 = vunpack.c.l.b16 %v341
    %v399 = vunpack.c.l.b16 %v342
    %v400 = vunpack.c.h.b16 %v342
    %v401 = vunpack.c.l.b16 %v343
    %v402 = vunpack.c.h.b16 %v343
    %v403 = vunpack.c.l.b16 %v344
    %v404 = vpack.c.b16 %v389, %v384
    %v405 = vpack.c.b16 %v390, %v385
    %v406 = vpack.c.b16 %v391, %v386
    %v407 = vpack.c.b16 %v392, %v387
    %v408 = vpack.c.b16 %v393, %v388
    %v409 = vpack.c.b16 %v399, %v394
    %v410 = vpack.c.b16 %v400, %v395
    %v411 = vpack.c.b16 %v401, %v396
    %v412 = vpack.c.b16 %v402, %v397
    %v413 = vpack.c.b16 %v403, %v398
    %v425 = vsel %vm271, %v331, 0
    %v428 = vsel %vm271, %v332, 0
    %430 = vmatprep.subr.bf16.mxu0 %v405
    %431 = vmatpush1.bf16.msra.mxu0 %v404
    %432 = vmatprep.subr.bf16.mxu0 %v410
    %433 = vmatpush1.bf16.msra.mxu0 %v409
    %434 = vmatprep.subr.bf16.mxu0 0
    %435 = vmatpush1.bf16.msra.mxu0 0
    %436 = vmatprep.subr.bf16.mxu0 0
    %437 = vmatpush1.bf16.msra.mxu0 0
    %438 = vmatprep.subr.bf16.mxu0 0
    %439 = vmatpush1.bf16.msra.mxu0 0
    %440 = vmatprep.subr.bf16.mxu0 0
    %441 = vmatpush1.bf16.msra.mxu0 0
    %442 = vmatprep.subr.bf16.mxu0 0
    %443 = vmatpush1.bf16.msra.mxu0 0
    %444 = vmatprep.subr.bf16.mxu0 0
    %445 = vmatpush1.bf16.msra.mxu0 0
    %446 = vmatprep.subr.bf16.mxu0 0
    %447 = vmatpush1.bf16.msra.mxu0 0
    %448 = vmatprep.subr.bf16.mxu0 0
    %449 = vmatpush1.bf16.msra.mxu0 0
    %450 = vmatprep.subr.bf16.mxu0 0
    %451 = vmatpush1.bf16.msra.mxu0 0
    %452 = vmatprep.subr.bf16.mxu0 0
    %453 = vmatpush1.bf16.msra.mxu0 0
    %454 = vmatprep.subr.bf16.mxu0 0
    %455 = vmatpush1.bf16.msra.mxu0 0
    %456 = vmatprep.subr.bf16.mxu0 0
    %457 = vmatpush1.bf16.msra.mxu0 0
    %458 = vmatprep.subr.bf16.mxu0 0
    %459 = vmatpush1.bf16.msra.mxu0 0
    %460 = vmatprep.subr.bf16.mxu0 0
    %461 = vmatpush1.bf16.msra.mxu0 0
    %462 = vmatprep.mubr.bf16.mxu0 0
    %463 = vmatmul.mubr.bf16.gmra.mrb[0].mxu0 %v425
    %v464 = vpop.f32.mrb[0].mxu0
    %v465 = vadd.f32 %v350, %v464
    %v466 = vpop.f32.mrb[0].mxu0
    %v467 = vadd.f32 %v354, %v466
    %v468 = vpop.f32.mrb[0].mxu0
    %v469 = vadd.f32 %v350, %v468
    %v470 = vpop.f32.mrb[0].mxu0
    %v471 = vadd.f32 %v354, %v470
    %472 = vmatprep.mubr.bf16.mxu0 0
    %473 = vmatmul.mubr.bf16.gmra.mrb[0].mxu0 %v428
    %v474 = vpop.f32.mrb[0].mxu0
    %v475 = vadd.f32 %v350, %v474
    %v476 = vpop.f32.mrb[0].mxu0
    %v477 = vadd.f32 %v354, %v476
    %v478 = vpop.f32.mrb[0].mxu0
    %v479 = vadd.f32 %v350, %v478
    %v480 = vpop.f32.mrb[0].mxu0
    %v481 = vadd.f32 %v354, %v480
    %482 = vdwg.mxu0
    %483 = vmatprep.subr.bf16.mxu0 %v407
    %484 = vmatpush1.bf16.msra.mxu0 %v406
    %485 = vmatprep.subr.bf16.mxu0 %v412
    %486 = vmatpush1.bf16.msra.mxu0 %v411
    %487 = vmatprep.subr.bf16.mxu0 0
    %488 = vmatpush1.bf16.msra.mxu0 0
    %489 = vmatprep.subr.bf16.mxu0 0
    %490 = vmatpush1.bf16.msra.mxu0 0
    %491 = vmatprep.subr.bf16.mxu0 0
    %492 = vmatpush1.bf16.msra.mxu0 0
    %493 = vmatprep.subr.bf16.mxu0 0
    %494 = vmatpush1.bf16.msra.mxu0 0
    %495 = vmatprep.subr.bf16.mxu0 0
    %496 = vmatpush1.bf16.msra.mxu0 0
    %497 = vmatprep.subr.bf16.mxu0 0
    %498 = vmatpush1.bf16.msra.mxu0 0
    %499 = vmatprep.subr.bf16.mxu0 0
    %500 = vmatpush1.bf16.msra.mxu0 0
    %501 = vmatprep.subr.bf16.mxu0 0
    %502 = vmatpush1.bf16.msra.mxu0 0
    %503 = vmatprep.subr.bf16.mxu0 0
    %504 = vmatpush1.bf16.msra.mxu0 0
    %505 = vmatprep.subr.bf16.mxu0 0
    %506 = vmatpush1.bf16.msra.mxu0 0
    %507 = vmatprep.subr.bf16.mxu0 0
    %508 = vmatpush1.bf16.msra.mxu0 0
    %509 = vmatprep.subr.bf16.mxu0 0
    %510 = vmatpush1.bf16.msra.mxu0 0
    %511 = vmatprep.subr.bf16.mxu0 0
    %512 = vmatpush1.bf16.msra.mxu0 0
    %513 = vmatprep.subr.bf16.mxu0 0
    %514 = vmatpush1.bf16.msra.mxu0 0
    %515 = vmatprep.mubr.bf16.mxu0 0
    %516 = vmatmul.mubr.bf16.gmra.mrb[0].mxu0 %v425
    %v517 = vpop.f32.mrb[0].mxu0
    %v518 = vadd.f32 %v358, %v517
    %v519 = vpop.f32.mrb[0].mxu0
    %v520 = vadd.f32 %v362, %v519
    %v521 = vpop.f32.mrb[0].mxu0
    %v522 = vadd.f32 %v358, %v521
    %v523 = vpop.f32.mrb[0].mxu0
    %v524 = vadd.f32 %v362, %v523
    %525 = vmatprep.mubr.bf16.mxu0 0
    %526 = vmatmul.mubr.bf16.gmra.mrb[0].mxu0 %v428
    %v527 = vpop.f32.mrb[0].mxu0
    %v528 = vadd.f32 %v358, %v527
    %v529 = vpop.f32.mrb[0].mxu0
    %v530 = vadd.f32 %v362, %v529
    %v531 = vpop.f32.mrb[0].mxu0
    %v532 = vadd.f32 %v358, %v531
    %v533 = vpop.f32.mrb[0].mxu0
    %v534 = vadd.f32 %v362, %v533
    %535 = vdwg.mxu0
    %536 = vmatprep.subr.bf16.mxu0 0
    %537 = vmatpush1.bf16.msra.mxu0 %v408
    %538 = vmatprep.subr.bf16.mxu0 0
    %539 = vmatpush1.bf16.msra.mxu0 %v413
    %540 = vmatprep.subr.bf16.mxu0 0
    %541 = vmatpush1.bf16.msra.mxu0 0
    %542 = vmatprep.subr.bf16.mxu0 0
    %543 = vmatpush1.bf16.msra.mxu0 0
    %544 = vmatprep.subr.bf16.mxu0 0
    %545 = vmatpush1.bf16.msra.mxu0 0
    %546 = vmatprep.subr.bf16.mxu0 0
    %547 = vmatpush1.bf16.msra.mxu0 0
    %548 = vmatprep.subr.bf16.mxu0 0
    %549 = vmatpush1.bf16.msra.mxu0 0
    %550 = vmatprep.subr.bf16.mxu0 0
    %551 = vmatpush1.bf16.msra.mxu0 0
    %552 = vmatprep.subr.bf16.mxu0 0
    %553 = vmatpush1.bf16.msra.mxu0 0
    %554 = vmatprep.subr.bf16.mxu0 0
    %555 = vmatpush1.bf16.msra.mxu0 0
    %556 = vmatprep.subr.bf16.mxu0 0
    %557 = vmatpush1.bf16.msra.mxu0 0
    %558 = vmatprep.subr.bf16.mxu0 0
    %559 = vmatpush1.bf16.msra.mxu0 0
    %560 = vmatprep.subr.bf16.mxu0 0
    %561 = vmatpush1.bf16.msra.mxu0 0
    %562 = vmatprep.subr.bf16.mxu0 0
    %563 = vmatpush1.bf16.msra.mxu0 0
    %564 = vmatprep.subr.bf16.mxu0 0
    %565 = vmatpush1.bf16.msra.mxu0 0
    %566 = vmatprep.subr.bf16.mxu0 0
    %567 = vmatpush1.bf16.msra.mxu0 0
    %568 = vmatprep.mubr.bf16.mxu0 0
    %569 = vmatmul.mubr.bf16.gmra.mrb[0].mxu0 %v425
    %v570 = vpop.f32.mrb[0].mxu0
    %v571 = vadd.f32 %v366, %v570
    %v572 = vpop.f32.mrb[0].mxu0
    %v573 = vpop.f32.mrb[0].mxu0
    %v574 = vadd.f32 %v366, %v573
    %v575 = vpop.f32.mrb[0].mxu0
    %576 = vmatprep.mubr.bf16.mxu0 0
    %577 = vmatmul.mubr.bf16.gmra.mrb[0].mxu0 %v428
    %v578 = vpop.f32.mrb[0].mxu0
    %v579 = vadd.f32 %v366, %v578
    %v580 = vpop.f32.mrb[0].mxu0
    %v581 = vpop.f32.mrb[0].mxu0
    %v582 = vadd.f32 %v366, %v581
    %v583 = vpop.f32.mrb[0].mxu0
    %584 = vdwg.mxu0
    %v585 = vld [vmem:[%s7] sm:$0x1f]
    %v587 = vlaneseq
    %v588 = vshrl.u32 %v587, 7
    %v589 = vsub.s32 0, %v588
    %v590 = vrot.slane %v585, %v589
    %v591 = vlaneseq
    %v592 = vshrl.u32 %v591, 7
    %v593 = vsub.s32 1, %v592
    %v594 = vrot.slane %v585, %v593
    %v595 = vlaneseq
    %v596 = vshrl.u32 %v595, 7
    %v597 = vsub.s32 2, %v596
    %v598 = vrot.slane %v585, %v597
    %v599 = vlaneseq
    %v600 = vshrl.u32 %v599, 7
    %v601 = vsub.s32 3, %v600
    %v602 = vrot.slane %v585, %v601
    %v603 = vlaneseq
    %v604 = vshrl.u32 %v603, 7
    %v605 = vsub.s32 4, %v604
    %v606 = vrot.slane %v585, %v605
    %v612 = vmul.f32 %v465, %v590
    %v613 = vmul.f32 %v467, %v594
    %v614 = vmul.f32 %v518, %v598
    %v615 = vmul.f32 %v520, %v602
    %v616 = vmul.f32 %v571, %v606
    %v617 = vmul.f32 %v469, %v590
    %v618 = vmul.f32 %v471, %v594
    %v619 = vmul.f32 %v522, %v598
    %v620 = vmul.f32 %v524, %v602
    %v621 = vmul.f32 %v574, %v606
    %v622 = vmul.f32 %v475, %v590
    %v623 = vmul.f32 %v477, %v594
    %v624 = vmul.f32 %v528, %v598
    %v625 = vmul.f32 %v530, %v602
    %v626 = vmul.f32 %v579, %v606
    %v627 = vmul.f32 %v479, %v590
    %v628 = vmul.f32 %v481, %v594
    %v629 = vmul.f32 %v532, %v598
    %v630 = vmul.f32 %v534, %v602
    %v631 = vmul.f32 %v582, %v606
    %v632 = vmin.f32 %v615, 4.1351666
    %v633 = vmin.f32 %v616, 4.1351666
    %v634 = vmin.f32 %v620, 4.1351666
    %v635 = vmin.f32 %v621, 4.1351666
    %v636 = vmin.f32 %v625, 4.1351666
    %v637 = vmin.f32 %v626, 4.1351666
    %v638 = vmin.f32 %v630, 4.1351666
    %v639 = vmin.f32 %v631, 4.1351666
    %v640 = vmul.f32 %v632, 1.442695
    %v641 = vpow.pop %v640
    %v642 = vmul.f32 %v633, 1.442695
    %v643 = vpow.pop %v642
    %v644 = vmul.f32 %v634, 1.442695
    %v645 = vpow.pop %v644
    %v646 = vmul.f32 %v635, 1.442695
    %v647 = vpow.pop %v646
    %v648 = vmul.f32 %v636, 1.442695
    %v649 = vpow.pop %v648
    %v650 = vmul.f32 %v637, 1.442695
    %v651 = vpow.pop %v650
    %v652 = vmul.f32 %v638, 1.442695
    %v653 = vpow.pop %v652
    %v654 = vmul.f32 %v639, 1.442695
    %v655 = vpow.pop %v654
    %656 = vmax.xlane.f32.xlu0 %v612
    %v657 = vpop.xlane.xlu0 %656
    %658 = vmax.xlane.f32.xlu0 %v617
    %v659 = vpop.xlane.xlu0 %658
    %660 = vmax.xlane.f32.xlu0 %v622
    %v661 = vpop.xlane.xlu0 %660
    %662 = vmax.xlane.f32.xlu0 %v627
    %v663 = vpop.xlane.xlu0 %662
    %v664 = vsub.f32 %v612, %v657
    %v665 = vsub.f32 %v617, %v659
    %v666 = vsub.f32 %v622, %v661
    %v667 = vsub.f32 %v627, %v663
    %v668 = vmul.f32 %v664, 1.442695
    %v669 = vpow.pop %v668
    %v670 = vmul.f32 %v665, 1.442695
    %v671 = vpow.pop %v670
    %v672 = vmul.f32 %v666, 1.442695
    %v673 = vpow.pop %v672
    %v674 = vmul.f32 %v667, 1.442695
    %v675 = vpow.pop %v674
    %676 = vadd.xlane.f32.xlu0 %v669
    %v677 = vpop.xlane.xlu0 %676
    %678 = vadd.xlane.f32.xlu0 %v671
    %v679 = vpop.xlane.xlu0 %678
    %680 = vadd.xlane.f32.xlu0 %v673
    %v681 = vpop.xlane.xlu0 %680
    %682 = vadd.xlane.f32.xlu0 %v675
    %v683 = vpop.xlane.xlu0 %682
    %v684 = vrcp.pop %v677
    %v685 = vmul.f32 %v669, %v684
    %v686 = vrcp.pop %v679
    %v687 = vmul.f32 %v671, %v686
    %v688 = vrcp.pop %v681
    %v689 = vmul.f32 %v673, %v688
    %v690 = vrcp.pop %v683
    %v691 = vmul.f32 %v675, %v690
    %v692 = vld [vmem:[%s8] sm:$0xff]
    %v693 = vld [vmem:[%s8 + $0x8] sm:$0xff]
    %v694 = vld [vmem:[%s8 + $0x10] sm:$0xff]
    %v695 = vld [vmem:[%s8 + $0x18] sm:$0xff]
    %700 = vrot.lane.b32.xlu0 %v692, 2
    %v701 = vpop.permute.xlu0 %700
    %702 = vrot.lane.b32.xlu0 %v693, 2
    %v703 = vpop.permute.xlu0 %702
    %704 = vrot.lane.b32.xlu0 %v694, 2
    %v705 = vpop.permute.xlu0 %704
    %706 = vrot.lane.b32.xlu0 %v695, 2
    %v707 = vpop.permute.xlu0 %706
    %v712 = vsub.f32 %v692, %v701
    %v713 = vsub.f32 %v693, %v703
    %v714 = vsub.f32 %v694, %v705
    %v715 = vsub.f32 %v695, %v707
    %v716 = vmul.f32 %v712, 0.5
    %v717 = vmul.f32 %v713, 0.5
    %v718 = vmul.f32 %v714, 0.5
    %v719 = vmul.f32 %v715, 0.5
    %724 = vrot.lane.b32.xlu0 %v716, 126
    %v725 = vpop.permute.xlu0 %724
    %726 = vrot.lane.b32.xlu0 %v717, 126
    %v727 = vpop.permute.xlu0 %726
    %728 = vrot.lane.b32.xlu0 %v718, 126
    %v729 = vpop.permute.xlu0 %728
    %730 = vrot.lane.b32.xlu0 %v719, 126
    %v731 = vpop.permute.xlu0 %730
    %v736 = vadd.f32 %v692, %v725
    %v737 = vadd.f32 %v693, %v727
    %v738 = vadd.f32 %v694, %v729
    %v739 = vadd.f32 %v695, %v731
    %741 = vset.pattern.permute.xlu0 2
    %742 = vperm.xlu0 %741, %v712
    %v743 = vpop.permute.xlu0 %742
    %746 = vset.pattern.permute.xlu0 2
    %747 = vperm.xlu0 %746, %v713
    %v748 = vpop.permute.xlu0 %747
    %751 = vset.pattern.permute.xlu0 2
    %752 = vperm.xlu0 %751, %v714
    %v753 = vpop.permute.xlu0 %752
    %756 = vset.pattern.permute.xlu0 2
    %757 = vperm.xlu0 %756, %v715
    %v758 = vpop.permute.xlu0 %757
    %v760 = vmul.f32 %v613, %v743
    %v761 = vmul.f32 %v618, %v748
    %v762 = vmul.f32 %v623, %v753
    %v763 = vmul.f32 %v628, %v758
    %765 = vset.pattern.permute.xlu0 0
    %766 = vperm.xlu0 %765, %v736
    %v767 = vpop.permute.xlu0 %766
    %770 = vset.pattern.permute.xlu0 0
    %771 = vperm.xlu0 %770, %v737
    %v772 = vpop.permute.xlu0 %771
    %775 = vset.pattern.permute.xlu0 0
    %776 = vperm.xlu0 %775, %v738
    %v777 = vpop.permute.xlu0 %776
    %780 = vset.pattern.permute.xlu0 0
    %781 = vperm.xlu0 %780, %v739
    %v782 = vpop.permute.xlu0 %781
    %v784 = vadd.f32 %v760, %v767
    %v785 = vadd.f32 %v761, %v772
    %v786 = vadd.f32 %v762, %v777
    %v787 = vadd.f32 %v763, %v782
    %788 = vset.pattern.permute.xlu0 3
    %789 = vperm.xlu0 %788, %v712
    %v790 = vpop.permute.xlu0 %789
    %792 = vset.pattern.permute.xlu0 3
    %793 = vperm.xlu0 %792, %v713
    %v794 = vpop.permute.xlu0 %793
    %796 = vset.pattern.permute.xlu0 3
    %797 = vperm.xlu0 %796, %v714
    %v798 = vpop.permute.xlu0 %797
    %800 = vset.pattern.permute.xlu0 3
    %801 = vperm.xlu0 %800, %v715
    %v802 = vpop.permute.xlu0 %801
    %v804 = vmul.f32 %v614, %v790
    %v805 = vmul.f32 %v619, %v794
    %v806 = vmul.f32 %v624, %v798
    %v807 = vmul.f32 %v629, %v802
    %808 = vset.pattern.permute.xlu0 1
    %809 = vperm.xlu0 %808, %v736
    %v810 = vpop.permute.xlu0 %809
    %812 = vset.pattern.permute.xlu0 1
    %813 = vperm.xlu0 %812, %v737
    %v814 = vpop.permute.xlu0 %813
    %816 = vset.pattern.permute.xlu0 1
    %817 = vperm.xlu0 %816, %v738
    %v818 = vpop.permute.xlu0 %817
    %820 = vset.pattern.permute.xlu0 1
    %821 = vperm.xlu0 %820, %v739
    %v822 = vpop.permute.xlu0 %821
    %v824 = vadd.f32 %v804, %v810
    %v825 = vadd.f32 %v805, %v814
    %v826 = vadd.f32 %v806, %v818
    %v827 = vadd.f32 %v807, %v822
    %v828 = vmul.f32 %v641, %v743
    %v829 = vmul.f32 %v645, %v748
    %v830 = vmul.f32 %v649, %v753
    %v831 = vmul.f32 %v653, %v758
    %v832 = vmul.f32 %v643, %v790
    %v833 = vmul.f32 %v647, %v794
    %v834 = vmul.f32 %v651, %v798
    %v835 = vmul.f32 %v655, %v802
    %v836 = vmul.f32 %v828, 0.5
    %v837 = vmul.f32 %v829, 0.5
    %v838 = vmul.f32 %v830, 0.5
    %v839 = vmul.f32 %v831, 0.5
    %v840 = vsub.f32 %v784, %v836
    %v841 = vsub.f32 %v785, %v837
    %v842 = vsub.f32 %v786, %v838
    %v843 = vsub.f32 %v787, %v839
    %v844 = vmax.f32 %v840, 0.0
    %v845 = vmax.f32 %v841, 0.0
    %v846 = vmax.f32 %v842, 0.0
    %v847 = vmax.f32 %v843, 0.0
    %848 = vset.pattern.permute.xlu0 5
    %849 = vperm.xlu0 %848, %v692
    %v850 = vpop.permute.xlu0 %849
    %852 = vset.pattern.permute.xlu0 5
    %853 = vperm.xlu0 %852, %v693
    %v854 = vpop.permute.xlu0 %853
    %856 = vset.pattern.permute.xlu0 5
    %857 = vperm.xlu0 %856, %v694
    %v858 = vpop.permute.xlu0 %857
    %860 = vset.pattern.permute.xlu0 5
    %861 = vperm.xlu0 %860, %v695
    %v862 = vpop.permute.xlu0 %861
    %v864 = vmin.f32 %v850, %v844
    %v865 = vmin.f32 %v854, %v845
    %v866 = vmin.f32 %v858, %v846
    %v867 = vmin.f32 %v862, %v847
    %v868 = vmul.f32 %v832, 0.5
    %v869 = vmul.f32 %v833, 0.5
    %v870 = vmul.f32 %v834, 0.5
    %v871 = vmul.f32 %v835, 0.5
    %v872 = vsub.f32 %v824, %v868
    %v873 = vsub.f32 %v825, %v869
    %v874 = vsub.f32 %v826, %v870
    %v875 = vsub.f32 %v827, %v871
    %v876 = vmax.f32 %v872, 0.0
    %v877 = vmax.f32 %v873, 0.0
    %v878 = vmax.f32 %v874, 0.0
    %v879 = vmax.f32 %v875, 0.0
    %880 = vset.pattern.permute.xlu0 4
    %881 = vperm.xlu0 %880, %v692
    %v882 = vpop.permute.xlu0 %881
    %884 = vset.pattern.permute.xlu0 4
    %885 = vperm.xlu0 %884, %v693
    %v886 = vpop.permute.xlu0 %885
    %888 = vset.pattern.permute.xlu0 4
    %889 = vperm.xlu0 %888, %v694
    %v890 = vpop.permute.xlu0 %889
    %892 = vset.pattern.permute.xlu0 4
    %893 = vperm.xlu0 %892, %v695
    %v894 = vpop.permute.xlu0 %893
    %v896 = vmin.f32 %v882, %v876
    %v897 = vmin.f32 %v886, %v877
    %v898 = vmin.f32 %v890, %v878
    %v899 = vmin.f32 %v894, %v879
    %v900 = vadd.f32 %v784, %v836
    %v901 = vadd.f32 %v785, %v837
    %v902 = vadd.f32 %v786, %v838
    %v903 = vadd.f32 %v787, %v839
    %v904 = vmax.f32 %v900, 0.0
    %v905 = vmax.f32 %v901, 0.0
    %v906 = vmax.f32 %v902, 0.0
    %v907 = vmax.f32 %v903, 0.0
    %v908 = vmin.f32 %v850, %v904
    %v909 = vmin.f32 %v854, %v905
    %v910 = vmin.f32 %v858, %v906
    %v911 = vmin.f32 %v862, %v907
    %v912 = vadd.f32 %v824, %v868
    %v913 = vadd.f32 %v825, %v869
    %v914 = vadd.f32 %v826, %v870
    %v915 = vadd.f32 %v827, %v871
    %v916 = vmax.f32 %v912, 0.0
    %v917 = vmax.f32 %v913, 0.0
    %v918 = vmax.f32 %v914, 0.0
    %v919 = vmax.f32 %v915, 0.0
    %v920 = vmin.f32 %v882, %v916
    %v921 = vmin.f32 %v886, %v917
    %v922 = vmin.f32 %v890, %v918
    %v923 = vmin.f32 %v894, %v919
    %924 = vst [vmem:[#allocation2] sm:$0xff] %v685
    %925 = vst [vmem:[#allocation2 + $0x8] sm:$0xff] %v864
    %926 = vst [vmem:[#allocation2 + $0x10] sm:$0xff] %v896
    %927 = vst [vmem:[#allocation2 + $0x18] sm:$0xff] %v908
    %928 = vst [vmem:[#allocation2 + $0x20] sm:$0xff] %v920
    %929 = vst [vmem:[#allocation2 + $0x28] sm:$0xff] %v687
    %930 = vst [vmem:[#allocation2 + $0x30] sm:$0xff] %v865
    %931 = vst [vmem:[#allocation2 + $0x38] sm:$0xff] %v897
    %932 = vst [vmem:[#allocation2 + $0x40] sm:$0xff] %v909
    %933 = vst [vmem:[#allocation2 + $0x48] sm:$0xff] %v921
    %934 = vst [vmem:[#allocation2 + $0x50] sm:$0xff] %v689
    %935 = vst [vmem:[#allocation2 + $0x58] sm:$0xff] %v866
    %936 = vst [vmem:[#allocation2 + $0x60] sm:$0xff] %v898
    %937 = vst [vmem:[#allocation2 + $0x68] sm:$0xff] %v910
    %938 = vst [vmem:[#allocation2 + $0x70] sm:$0xff] %v922
    %939 = vst [vmem:[#allocation2 + $0x78] sm:$0xff] %v691
    %940 = vst [vmem:[#allocation2 + $0x80] sm:$0xff] %v867
    %941 = vst [vmem:[#allocation2 + $0x88] sm:$0xff] %v899
    %942 = vst [vmem:[#allocation2 + $0x90] sm:$0xff] %v911
    %943 = vst [vmem:[#allocation2 + $0x98] sm:$0xff] %v923
    // Predicated region
    $region38: #{device_forward.1} parent=1 // pred_check
      _
    $region39: #{device_forward.1} parent=1 // pred_check_branch
      %945 = sbr.rel (0) target = $region41
    $region40: #{device_forward.1} parent=1 // pred_region
      %s947 = ssub.s32 2560, 2560
      %948 = vsyncadd [#allocation3], %s947
      %s949 = sshll.u32 [#allocation2], 4
      %s950 = int_to_ptr.vmem [resolvable:$true] %s949
      %955 = dma.vmem_to_hbm [thread:$0]  %s950, 2560, %s9, [#allocation3], 640, 640, 40
    $region41: #{device_forward.1} parent=1 // pred_fallthru
      _
    // Predicated region
    $region42: #{device_forward.1} parent=1 // pred_check
      _
    $region43: #{device_forward.1} parent=1 // pred_check_branch
      %957 = sbr.rel (0) target = $region45
    $region44: #{device_forward.1} parent=1 // pred_region
      %958 = dma.done [#allocation3], 2560
    $region45: #{device_forward.1} parent=1 // pred_fallthru
      _
    %959 = vsyncpa [#allocation3], 1

</llo_original>
